<compile_context>
chip_gen: v7x
topology: tpu7x:2x2x1
jax: 0.10.0
libtpu: 0.0.40
codegen_flags: <defaults>
</compile_context>

<pallas_src>
import jax
import jax.numpy as jnp
from jax.experimental import pallas as pl
from jax.experimental.pallas import tpu as pltpu

_COMPUTE_DTYPE = jnp.bfloat16  # matmul operand dtype (accumulation is always f32)


# ----------------------------------------------------------------------------- kernel


def _dann_tile_kernel(fs_ref, ft_ref, ws_ref, wt_ref, valid_ref,
                      w1_ref, b1_ref, w2_ref, b2_ref, w3_ref, b3_ref,
                      part_ref):
    """One batch tile (TB rows of each domain) -> 4 partial scalars packed lane-dense.

    fs_ref/ft_ref : (TB, F) bf16   source / target feature tiles
    ws_ref/wt_ref : (1, TB) f32    per-instance BCE weights (batch on lanes; 0 for padded rows)
    valid_ref     : (1, TB) f32    1.0 for real rows, 0.0 for padding (accuracy mask)
    w1/b1         : (F, H) bf16, (1, H) f32
    w2/b2         : (H, H) bf16, (1, H) f32
    w3/b3         : (1, H) f32, (1, 1) f32   -- final Linear(H,1) stored transposed as (1,H)
    part_ref      : (1, 1, 128)    lanes [0..3] = [sum_bce_s, sum_bce_t, cnt_s, cnt_t]
    """
    w1 = w1_ref[...]
    b1 = b1_ref[...]
    w2 = w2_ref[...]
    b2 = b2_ref[...]
    w3 = w3_ref[...]
    b3 = b3_ref[...]

    def logits_row(x):
        # bf16 MXU matmuls with f32 accumulation; ReLU on the VPU.
        h1 = jnp.maximum(jnp.dot(x, w1, preferred_element_type=jnp.float32) + b1, 0.0)
        h2 = jnp.maximum(
            jnp.dot(h1.astype(w2.dtype), w2, preferred_element_type=jnp.float32) + b2, 0.0)
        # Final Linear(H,1) as (1,H) x (TB,H)^T -> lane-dense (1, TB) logits.
        # Same rhs-transposed contraction pattern as flash-attention QK^T: lowers to the MXU
        # directly, no XLU transpose of the (TB,H) activation.
        return jax.lax.dot_general(
            w3, h2, (((1,), (1,)), ((), ())),
            preferred_element_type=jnp.float32) + b3

    logit_s = logits_row(fs_ref[...])          # (1, TB) f32
    logit_t = logits_row(ft_ref[...])          # (1, TB) f32

    def softplus(x):
        # numerically stable softplus built from elementwise primitives only
        return jnp.maximum(x, 0.0) + jnp.log(1.0 + jnp.exp(-jnp.abs(x)))

    # -log(sigmoid(x)) = softplus(-x); -log(1 - sigmoid(x)) = softplus(x).
    # torch.nn.functional.binary_cross_entropy clamps each log term at -100 -> cap at 100.
    bce_s = jnp.minimum(softplus(-logit_s), 100.0)
    bce_t = jnp.minimum(softplus(logit_t), 100.0)

    valid = valid_ref[...]
    # Labels are structural: source half -> target 1, target half -> target 0.
    loss_s = jnp.sum(ws_ref[...] * bce_s, keepdims=True)            # (1,1) partial sum
    loss_t = jnp.sum(wt_ref[...] * bce_t, keepdims=True)            # (1,1) partial sum
    # Accuracy from the logit sign (sigmoid(x) >= 0.5  <=>  x >= 0); padded rows masked out.
    cnt_s = jnp.sum(valid * (logit_s >= 0.0).astype(jnp.float32), keepdims=True)
    cnt_t = jnp.sum(valid * (logit_t < 0.0).astype(jnp.float32), keepdims=True)

    lane = jax.lax.broadcasted_iota(jnp.int32, (1, 128), 1)
    row = (jnp.where(lane == 0, loss_s, 0.0)
           + jnp.where(lane == 1, loss_t, 0.0)
           + jnp.where(lane == 2, cnt_s, 0.0)
           + jnp.where(lane == 3, cnt_t, 0.0))
    part_ref[...] = row.reshape(1, 1, 128)


# ----------------------------------------------------------------------------- wrapper helpers


def _cdiv(a, b):
    return -(-a // b)


def _round_up(a, b):
    return _cdiv(a, b) * b


def _vmem_budget():
    """Generation-aware (budget, vmem_limit) in bytes: ~96 MiB / ~108 MiB on v5e/v6e (128 MiB),
    ~48 MiB / ~54 MiB on v7x (64 MiB)."""
    try:
        cap = int(pltpu.get_tpu_info().vmem_capacity_bytes)
    except Exception:
        cap = 64 * 1024 * 1024
    return int(cap * 0.75), int(cap * 0.85)


def _pick_tiling(n, feat, hidden, feat_itemsize, budget):
    """Choose (TB, N_pad): TB is a multiple of 128 that divides N_pad, sized to fit the
    per-generation VMEM budget, preferring >=2 (and even) grid steps with minimal padding."""
    h_pad = max(hidden, 128)
    # resident weights (double-buffered to be conservative): w1/w2 in bf16, biases/w3 in f32
    resident = (2 * (feat * hidden + hidden * hidden) * feat_itemsize
                + 2 * (3 * h_pad + 128) * 4)

    def fits(tb):
        feat_tiles = 2 * 2 * tb * feat * feat_itemsize     # f_s + f_t tiles, double-buffered
        rows = 3 * 2 * max(tb, 128) * 4                    # w_s / w_t / valid (1,TB) rows
        acts = 4 * tb * h_pad * 4                          # h1/h2 f32 activations, both domains
        out = 2 * 128 * 4
        return resident + feat_tiles + rows + acts + out <= budget

    tb_max = 128
    for cand in (256, 512, 1024, 2048):
        if fits(cand):
            tb_max = cand

    n_pad = _round_up(max(n, 1), 128)
    n_blocks = n_pad // 128
    max_bpt = max(1, tb_max // 128)
    if n_blocks == 1:
        bpt = 1                                            # single 128-row tile (tiny batch)
    else:
        # divisors of n_blocks that leave >= 2 tiles (keeps pipelining + both v7x TCs busy)
        cands = [b for b in range(1, min(max_bpt, n_blocks // 2) + 1) if n_blocks % b == 0]
        even = [b for b in cands if (n_blocks // b) % 2 == 0]
        bpt = max(even) if even else max(cands)
    return bpt * 128, n_pad
    # TODO(synk): weights are kept fully resident; very large F/H would need an extra K grid axis.


# ----------------------------------------------------------------------------- wrapper


@jax.jit
def dann_loss(f_s, f_t, w_s, w_t, params):
    """Returns (loss_scalar, domain_discriminator_accuracy). Requires N_s == N_t."""
    w1, b1, w2, b2, w3, b3 = params
    n, feat = f_s.shape
    assert f_t.shape[0] == n, "source/target batch sizes must match (torch.chunk(2) semantics)"
    hidden = w1.shape[1]

    if w_s is None:
        w_s = jnp.ones((n,), jnp.float32)
    if w_t is None:
        w_t = jnp.ones((n,), jnp.float32)

    cdt = _COMPUTE_DTYPE
    budget, vmem_limit = _vmem_budget()
    tb, n_pad = _pick_tiling(n, feat, hidden, jnp.dtype(cdt).itemsize, budget)
    n_tiles = n_pad // tb
    pad = n_pad - n

    # bf16 features halve HBM traffic and feed the native bf16 MXU path; padded rows are zero.
    fs = jnp.pad(f_s.astype(cdt), ((0, pad), (0, 0)))
    ft = jnp.pad(f_t.astype(cdt), ((0, pad), (0, 0)))
    # batch on lanes; padded rows get zero weight (masks the loss) and are marked invalid
    ws_row = jnp.pad(w_s.astype(jnp.float32).reshape(1, n), ((0, 0), (0, pad)))
    wt_row = jnp.pad(w_t.astype(jnp.float32).reshape(1, n), ((0, 0), (0, pad)))
    valid_row = (jax.lax.broadcasted_iota(jnp.int32, (1, n_pad), 1) < n).astype(jnp.float32)

    w1c = w1.astype(cdt)
    w2c = w2.astype(cdt)
    b1r = b1.reshape(1, hidden).astype(jnp.float32)
    b2r = b2.reshape(1, hidden).astype(jnp.float32)
    w3r = w3.reshape(1, hidden).astype(jnp.float32)
    b3r = b3.reshape(1, 1).astype(jnp.float32)

    grid_spec = pltpu.PrefetchScalarGridSpec(
        num_scalar_prefetch=0,
        grid=(n_tiles,),
        in_specs=[
            pl.BlockSpec((tb, feat), lambda i: (i, 0)),        # f_s tile (bf16)
            pl.BlockSpec((tb, feat), lambda i: (i, 0)),        # f_t tile (bf16)
            pl.BlockSpec((1, tb), lambda i: (0, i)),           # w_s tile (lane-dense)
            pl.BlockSpec((1, tb), lambda i: (0, i)),           # w_t tile (lane-dense)
            pl.BlockSpec((1, tb), lambda i: (0, i)),           # valid mask tile
            pl.BlockSpec((feat, hidden), lambda i: (0, 0)),    # w1 (resident, bf16)
            pl.BlockSpec((1, hidden), lambda i: (0, 0)),       # b1
            pl.BlockSpec((hidden, hidden), lambda i: (0, 0)),  # w2 (resident, bf16)
            pl.BlockSpec((1, hidden), lambda i: (0, 0)),       # b2
            pl.BlockSpec((1, hidden), lambda i: (0, 0)),       # w3 (transposed)
            pl.BlockSpec((1, 1), lambda i: (0, 0)),            # b3
        ],
        out_specs=pl.BlockSpec((1, 1, 128), lambda i: (i, 0, 0)),
    )

    partials = pl.pallas_call(
        _dann_tile_kernel,
        out_shape=jax.ShapeDtypeStruct((n_tiles, 1, 128), jnp.float32),
        grid_spec=grid_spec,
        compiler_params=pltpu.CompilerParams(
            dimension_semantics=("parallel",),          # independent per-tile partials
            vmem_limit_bytes=vmem_limit,
        ),
    )(fs, ft, ws_row, wt_row, valid_row, w1c, b1r, w2c, b2r, w3r, b3r)

    sums = jnp.sum(partials[:, 0, :], axis=0)             # tiny (n_tiles,128) -> (128,)
    loss = 0.5 * (sums[0] / n + sums[1] / n)               # 0.5*(mean BCE_s + mean BCE_t)
    accuracy = 50.0 * (sums[2] / n + sums[3] / n)          # 0.5*(acc_s + acc_t) in percent
    return loss, accuracy


def init_discriminator_params(key, in_feature, hidden_size):
    """Deterministic init of the 3-layer discriminator MLP (batch_norm=False variant)."""
    k1, k2, k3 = jax.random.split(key, 3)
    w1 = jax.random.normal(k1, (in_feature, hidden_size), jnp.float32) * 0.1
    b1 = jnp.zeros((1, hidden_size), jnp.float32)
    w2 = jax.random.normal(k2, (hidden_size, hidden_size), jnp.float32) * 0.1
    b2 = jnp.zeros((1, hidden_size), jnp.float32)
    # final Linear(hidden, 1) stored transposed as (1, hidden)
    w3 = jax.random.normal(k3, (1, hidden_size), jnp.float32) * 0.1
    b3 = jnp.zeros((1, 1), jnp.float32)
    return (w1, b1, w2, b2, w3, b3)


# ----------------------------------------------------------------------------- reference + test


def _reference(f_s, f_t, w_s, w_t, params):
    """Pure-JAX reference mirroring the kernel's dtype policy (bf16 matmuls, f32 accumulation)
    with the torch-style sigmoid + clamped-log BCE formulation."""
    w1, b1, w2, b2, w3, b3 = params
    cdt = _COMPUTE_DTYPE

    def disc(f):
        h1 = jnp.maximum(
            jnp.dot(f.astype(cdt), w1.astype(cdt),
                    preferred_element_type=jnp.float32) + b1.reshape(1, -1), 0.0)
        h2 = jnp.maximum(
            jnp.dot(h1.astype(cdt), w2.astype(cdt),
                    preferred_element_type=jnp.float32) + b2.reshape(1, -1), 0.0)
        logit = jnp.dot(h2, w3.reshape(1, -1).T.astype(jnp.float32),
                        preferred_element_type=jnp.float32) + b3.reshape(1, 1)
        return jax.nn.sigmoid(logit)                      # (N, 1)

    d_s, d_t = disc(f_s), disc(f_t)
    bce_s = jnp.mean(w_s.reshape(-1, 1) * jnp.minimum(-jnp.log(d_s), 100.0))
    bce_t = jnp.mean(w_t.reshape(-1, 1) * jnp.minimum(-jnp.log(1.0 - d_t), 100.0))
    loss = 0.5 * (bce_s + bce_t)
    acc = 50.0 * (jnp.mean((d_s >= 0.5).astype(jnp.float32))
                  + jnp.mean((d_t < 0.5).astype(jnp.float32)))
    return loss, acc


if __name__ == "__main__":
    key = jax.random.PRNGKey(0)
    k_small, k_big = jax.random.split(key)

    def run_case(n, feat, hidden, k):
        k_fs, k_ft, k_ws, k_wt, k_p = jax.random.split(k, 5)
        f_s = jax.random.normal(k_fs, (n, feat), jnp.float32)
        f_t = jax.random.normal(k_ft, (n, feat), jnp.float32)
        w_s = jax.random.uniform(k_ws, (n,), jnp.float32, 0.5, 1.5)
        w_t = jax.random.uniform(k_wt, (n,), jnp.float32, 0.5, 1.5)
        params = init_discriminator_params(k_p, feat, hidden)

        loss, acc = dann_loss(f_s, f_t, w_s, w_t, params)
        jax.block_until_ready(loss)
        jax.block_until_ready(acc)

        exp_loss, exp_acc = _reference(f_s, f_t, w_s, w_t, params)
        assert jnp.allclose(loss, exp_loss, rtol=2e-4, atol=1e-4), (loss, exp_loss)
        assert jnp.allclose(acc, exp_acc, rtol=1e-5, atol=0.2), (acc, exp_acc)

    # padded single-tile path (small shapes consistent with the module; N=8 -> padded to 128)
    run_case(8, 32, 32, k_small)
    # multi-tile path (N=384 -> 3 tiles of 128, no padding) exercising the pipelined grid
    run_case(384, 256, 128, k_big)

    print("KERNEL_OK")
</pallas_src>

<mosaic_0001>
module attributes {stable_mosaic.version = 11 : i64} {
  func.func @_dann_tile_kernel(%arg0: i32, %arg1: memref<128x32xbf16, #tpu.memory_space<vmem>>, %arg2: memref<128x32xbf16, #tpu.memory_space<vmem>>, %arg3: memref<1x128xf32, #tpu.memory_space<vmem>>, %arg4: memref<1x128xf32, #tpu.memory_space<vmem>>, %arg5: memref<1x128xf32, #tpu.memory_space<vmem>>, %arg6: memref<32x32xbf16, #tpu.memory_space<vmem>>, %arg7: memref<1x32xf32, #tpu.memory_space<vmem>>, %arg8: memref<32x32xbf16, #tpu.memory_space<vmem>>, %arg9: memref<1x32xf32, #tpu.memory_space<vmem>>, %arg10: memref<1x32xf32, #tpu.memory_space<vmem>>, %arg11: memref<1x1xf32, #tpu.memory_space<vmem>>, %arg12: memref<1x1x128xf32, #tpu.memory_space<vmem>>) attributes {dimension_semantics = [#tpu.dimension_semantics<parallel>], iteration_bounds = array<i64: 1>, scalar_prefetch = 0 : i64, scratch_operands = 0 : i64, tpu.core_type = #tpu.core_type<tc>, window_params = [{transform_indices = @transform_0, window_bounds = array<i64: 128, 32>}, {transform_indices = @transform_1, window_bounds = array<i64: 128, 32>}, {transform_indices = @transform_2, window_bounds = array<i64: 1, 128>}, {transform_indices = @transform_3, window_bounds = array<i64: 1, 128>}, {transform_indices = @transform_4, window_bounds = array<i64: 1, 128>}, {pipeline_mode = #tpu.pipeline_mode<synchronous>, transform_indices = @transform_5, window_bounds = array<i64: 32, 32>}, {pipeline_mode = #tpu.pipeline_mode<synchronous>, transform_indices = @transform_6, window_bounds = array<i64: 1, 32>}, {pipeline_mode = #tpu.pipeline_mode<synchronous>, transform_indices = @transform_7, window_bounds = array<i64: 32, 32>}, {pipeline_mode = #tpu.pipeline_mode<synchronous>, transform_indices = @transform_8, window_bounds = array<i64: 1, 32>}, {pipeline_mode = #tpu.pipeline_mode<synchronous>, transform_indices = @transform_9, window_bounds = array<i64: 1, 32>}, {pipeline_mode = #tpu.pipeline_mode<synchronous>, transform_indices = @transform_10, window_bounds = array<i64: 1, 1>}, {transform_indices = @transform_11, window_bounds = array<i64: 1, 1, 128>}]} {
    %c0 = arith.constant 0 : index
    %c0_0 = arith.constant 0 : index
    %0 = vector.load %arg6[%c0, %c0_0] : memref<32x32xbf16, #tpu.memory_space<vmem>>, vector<32x32xbf16>
    %c0_1 = arith.constant 0 : index
    %c0_2 = arith.constant 0 : index
    %1 = vector.load %arg7[%c0_1, %c0_2] : memref<1x32xf32, #tpu.memory_space<vmem>>, vector<1x32xf32>
    %c0_3 = arith.constant 0 : index
    %c0_4 = arith.constant 0 : index
    %2 = vector.load %arg8[%c0_3, %c0_4] : memref<32x32xbf16, #tpu.memory_space<vmem>>, vector<32x32xbf16>
    %c0_5 = arith.constant 0 : index
    %c0_6 = arith.constant 0 : index
    %3 = vector.load %arg9[%c0_5, %c0_6] : memref<1x32xf32, #tpu.memory_space<vmem>>, vector<1x32xf32>
    %c0_7 = arith.constant 0 : index
    %c0_8 = arith.constant 0 : index
    %4 = vector.load %arg10[%c0_7, %c0_8] : memref<1x32xf32, #tpu.memory_space<vmem>>, vector<1x32xf32>
    %c0_9 = arith.constant 0 : index
    %c0_10 = arith.constant 0 : index
    %5 = vector.load %arg11[%c0_9, %c0_10] : memref<1x1xf32, #tpu.memory_space<vmem>>, vector<1x1xf32>
    %c0_11 = arith.constant 0 : index
    %c0_12 = arith.constant 0 : index
    %6 = vector.load %arg1[%c0_11, %c0_12] : memref<128x32xbf16, #tpu.memory_space<vmem>>, vector<128x32xbf16>
    %cst = arith.constant dense<0.000000e+00> : vector<128x32xf32>
    %7 = tpu.matmul %6, %0, %cst {dimension_numbers = #tpu.dot_dimension_numbers<[1], [0], [0], [1], [0, 0, 1, 1], [], []>} : vector<128x32xbf16>, vector<32x32xbf16>, vector<128x32xf32> -> vector<128x32xf32>
    %8 = vector.broadcast %1 : vector<1x32xf32> to vector<128x32xf32>
    %9 = arith.addf %7, %8 : vector<128x32xf32>
    %cst_13 = arith.constant 0.000000e+00 : f32
    %10 = vector.broadcast %cst_13 : f32 to vector<128x32xf32>
    %11 = arith.maximumf %9, %10 : vector<128x32xf32>
    %12 = arith.truncf %11 : vector<128x32xf32> to vector<128x32xbf16>
    %cst_14 = arith.constant dense<0.000000e+00> : vector<128x32xf32>
    %13 = tpu.matmul %12, %2, %cst_14 {dimension_numbers = #tpu.dot_dimension_numbers<[1], [0], [0], [1], [0, 0, 1, 1], [], []>} : vector<128x32xbf16>, vector<32x32xbf16>, vector<128x32xf32> -> vector<128x32xf32>
    %14 = vector.broadcast %3 : vector<1x32xf32> to vector<128x32xf32>
    %15 = arith.addf %13, %14 : vector<128x32xf32>
    %cst_15 = arith.constant 0.000000e+00 : f32
    %16 = vector.broadcast %cst_15 : f32 to vector<128x32xf32>
    %17 = arith.maximumf %15, %16 : vector<128x32xf32>
    %cst_16 = arith.constant dense<0.000000e+00> : vector<1x128xf32>
    %18 = tpu.matmul %4, %17, %cst_16 {dimension_numbers = #tpu.dot_dimension_numbers<[1], [1], [0], [0], [0, 0, 1, 0], [], []>} : vector<1x32xf32>, vector<128x32xf32>, vector<1x128xf32> -> vector<1x128xf32>
    %19 = vector.broadcast %5 : vector<1x1xf32> to vector<1x128xf32>
    %20 = arith.addf %18, %19 : vector<1x128xf32>
    %c0_17 = arith.constant 0 : index
    %c0_18 = arith.constant 0 : index
    %21 = vector.load %arg2[%c0_17, %c0_18] : memref<128x32xbf16, #tpu.memory_space<vmem>>, vector<128x32xbf16>
    %cst_19 = arith.constant dense<0.000000e+00> : vector<128x32xf32>
    %22 = tpu.matmul %21, %0, %cst_19 {dimension_numbers = #tpu.dot_dimension_numbers<[1], [0], [0], [1], [0, 0, 1, 1], [], []>} : vector<128x32xbf16>, vector<32x32xbf16>, vector<128x32xf32> -> vector<128x32xf32>
    %23 = vector.broadcast %1 : vector<1x32xf32> to vector<128x32xf32>
    %24 = arith.addf %22, %23 : vector<128x32xf32>
    %cst_20 = arith.constant 0.000000e+00 : f32
    %25 = vector.broadcast %cst_20 : f32 to vector<128x32xf32>
    %26 = arith.maximumf %24, %25 : vector<128x32xf32>
    %27 = arith.truncf %26 : vector<128x32xf32> to vector<128x32xbf16>
    %cst_21 = arith.constant dense<0.000000e+00> : vector<128x32xf32>
    %28 = tpu.matmul %27, %2, %cst_21 {dimension_numbers = #tpu.dot_dimension_numbers<[1], [0], [0], [1], [0, 0, 1, 1], [], []>} : vector<128x32xbf16>, vector<32x32xbf16>, vector<128x32xf32> -> vector<128x32xf32>
    %29 = vector.broadcast %3 : vector<1x32xf32> to vector<128x32xf32>
    %30 = arith.addf %28, %29 : vector<128x32xf32>
    %cst_22 = arith.constant 0.000000e+00 : f32
    %31 = vector.broadcast %cst_22 : f32 to vector<128x32xf32>
    %32 = arith.maximumf %30, %31 : vector<128x32xf32>
    %cst_23 = arith.constant dense<0.000000e+00> : vector<1x128xf32>
    %33 = tpu.matmul %4, %32, %cst_23 {dimension_numbers = #tpu.dot_dimension_numbers<[1], [1], [0], [0], [0, 0, 1, 0], [], []>} : vector<1x32xf32>, vector<128x32xf32>, vector<1x128xf32> -> vector<1x128xf32>
    %34 = vector.broadcast %5 : vector<1x1xf32> to vector<1x128xf32>
    %35 = arith.addf %33, %34 : vector<1x128xf32>
    %cst_24 = arith.constant 0.000000e+00 : f32
    %36 = vector.broadcast %cst_24 : f32 to vector<1x128xf32>
    %37 = arith.subf %36, %20 : vector<1x128xf32>
    %cst_25 = arith.constant 0.000000e+00 : f32
    %38 = vector.broadcast %cst_25 : f32 to vector<1x128xf32>
    %39 = arith.maximumf %37, %38 : vector<1x128xf32>
    %40 = math.absf %37 : vector<1x128xf32>
    %cst_26 = arith.constant 0.000000e+00 : f32
    %41 = vector.broadcast %cst_26 : f32 to vector<1x128xf32>
    %42 = arith.subf %41, %40 : vector<1x128xf32>
    %43 = math.exp %42 : vector<1x128xf32>
    %cst_27 = arith.constant 1.000000e+00 : f32
    %44 = vector.broadcast %cst_27 : f32 to vector<1x128xf32>
    %45 = arith.addf %44, %43 : vector<1x128xf32>
    %46 = math.log %45 : vector<1x128xf32>
    %47 = arith.addf %39, %46 : vector<1x128xf32>
    %cst_28 = arith.constant 1.000000e+02 : f32
    %48 = vector.broadcast %cst_28 : f32 to vector<1x128xf32>
    %49 = arith.minimumf %47, %48 : vector<1x128xf32>
    %cst_29 = arith.constant 0.000000e+00 : f32
    %50 = vector.broadcast %cst_29 : f32 to vector<1x128xf32>
    %51 = arith.maximumf %35, %50 : vector<1x128xf32>
    %52 = math.absf %35 : vector<1x128xf32>
    %cst_30 = arith.constant 0.000000e+00 : f32
    %53 = vector.broadcast %cst_30 : f32 to vector<1x128xf32>
    %54 = arith.subf %53, %52 : vector<1x128xf32>
    %55 = math.exp %54 : vector<1x128xf32>
    %cst_31 = arith.constant 1.000000e+00 : f32
    %56 = vector.broadcast %cst_31 : f32 to vector<1x128xf32>
    %57 = arith.addf %56, %55 : vector<1x128xf32>
    %58 = math.log %57 : vector<1x128xf32>
    %59 = arith.addf %51, %58 : vector<1x128xf32>
    %cst_32 = arith.constant 1.000000e+02 : f32
    %60 = vector.broadcast %cst_32 : f32 to vector<1x128xf32>
    %61 = arith.minimumf %59, %60 : vector<1x128xf32>
    %c0_33 = arith.constant 0 : index
    %c0_34 = arith.constant 0 : index
    %62 = vector.load %arg5[%c0_33, %c0_34] : memref<1x128xf32, #tpu.memory_space<vmem>>, vector<1x128xf32>
    %c0_35 = arith.constant 0 : index
    %c0_36 = arith.constant 0 : index
    %63 = vector.load %arg3[%c0_35, %c0_36] : memref<1x128xf32, #tpu.memory_space<vmem>>, vector<1x128xf32>
    %64 = arith.mulf %63, %49 : vector<1x128xf32>
    %65 = vector.shape_cast %64 : vector<1x128xf32> to vector<1x1x128xf32>
    %cst_37 = arith.constant dense<0.000000e+00> : vector<1xf32>
    %66 = vector.multi_reduction <add>, %65, %cst_37 [1, 2] : vector<1x1x128xf32> to vector<1xf32>
    %67 = vector.shape_cast %66 : vector<1xf32> to vector<1x1x1xf32>
    %68 = vector.extract %67[0, 0, 0] : f32 from vector<1x1x1xf32>
    %69 = vector.broadcast %68 : f32 to vector<1x1xf32>
    %c0_38 = arith.constant 0 : index
    %c0_39 = arith.constant 0 : index
    %70 = vector.load %arg4[%c0_38, %c0_39] : memref<1x128xf32, #tpu.memory_space<vmem>>, vector<1x128xf32>
    %71 = arith.mulf %70, %61 : vector<1x128xf32>
    %72 = vector.shape_cast %71 : vector<1x128xf32> to vector<1x1x128xf32>
    %cst_40 = arith.constant dense<0.000000e+00> : vector<1xf32>
    %73 = vector.multi_reduction <add>, %72, %cst_40 [1, 2] : vector<1x1x128xf32> to vector<1xf32>
    %74 = vector.shape_cast %73 : vector<1xf32> to vector<1x1x1xf32>
    %75 = vector.extract %74[0, 0, 0] : f32 from vector<1x1x1xf32>
    %76 = vector.broadcast %75 : f32 to vector<1x1xf32>
    %cst_41 = arith.constant 0.000000e+00 : f32
    %77 = vector.broadcast %cst_41 : f32 to vector<1x128xf32>
    %78 = arith.cmpf oge, %20, %77 : vector<1x128xf32>
    %79 = arith.extui %78 : vector<1x128xi1> to vector<1x128xi32>
    %80 = arith.sitofp %79 : vector<1x128xi32> to vector<1x128xf32>
    %81 = arith.mulf %62, %80 : vector<1x128xf32>
    %82 = vector.shape_cast %81 : vector<1x128xf32> to vector<1x1x128xf32>
    %cst_42 = arith.constant dense<0.000000e+00> : vector<1xf32>
    %83 = vector.multi_reduction <add>, %82, %cst_42 [1, 2] : vector<1x1x128xf32> to vector<1xf32>
    %84 = vector.shape_cast %83 : vector<1xf32> to vector<1x1x1xf32>
    %85 = vector.extract %84[0, 0, 0] : f32 from vector<1x1x1xf32>
    %86 = vector.broadcast %85 : f32 to vector<1x1xf32>
    %cst_43 = arith.constant 0.000000e+00 : f32
    %87 = vector.broadcast %cst_43 : f32 to vector<1x128xf32>
    %88 = arith.cmpf olt, %35, %87 : vector<1x128xf32>
    %89 = arith.extui %88 : vector<1x128xi1> to vector<1x128xi32>
    %90 = arith.sitofp %89 : vector<1x128xi32> to vector<1x128xf32>
    %91 = arith.mulf %62, %90 : vector<1x128xf32>
    %92 = vector.shape_cast %91 : vector<1x128xf32> to vector<1x1x128xf32>
    %cst_44 = arith.constant dense<0.000000e+00> : vector<1xf32>
    %93 = vector.multi_reduction <add>, %92, %cst_44 [1, 2] : vector<1x1x128xf32> to vector<1xf32>
    %94 = vector.shape_cast %93 : vector<1xf32> to vector<1x1x1xf32>
    %95 = vector.extract %94[0, 0, 0] : f32 from vector<1x1x1xf32>
    %96 = vector.broadcast %95 : f32 to vector<1x1xf32>
    %97 = tpu.iota {dimensions = array<i32: 1>} : vector<1x128xi32>
    %c0_i32 = arith.constant 0 : i32
    %98 = vector.broadcast %c0_i32 : i32 to vector<1x128xi32>
    %99 = arith.cmpi eq, %97, %98 : vector<1x128xi32>
    %cst_45 = arith.constant 0.000000e+00 : f32
    %100 = vector.shape_cast %69 : vector<1x1xf32> to vector<1x1xf32>
    %101 = vector.broadcast %100 : vector<1x1xf32> to vector<1x128xf32>
    %102 = vector.broadcast %cst_45 : f32 to vector<1x128xf32>
    %103 = arith.select %99, %101, %102 : vector<1x128xi1>, vector<1x128xf32>
    %c1_i32 = arith.constant 1 : i32
    %104 = vector.broadcast %c1_i32 : i32 to vector<1x128xi32>
    %105 = arith.cmpi eq, %97, %104 : vector<1x128xi32>
    %cst_46 = arith.constant 0.000000e+00 : f32
    %106 = vector.shape_cast %76 : vector<1x1xf32> to vector<1x1xf32>
    %107 = vector.broadcast %106 : vector<1x1xf32> to vector<1x128xf32>
    %108 = vector.broadcast %cst_46 : f32 to vector<1x128xf32>
    %109 = arith.select %105, %107, %108 : vector<1x128xi1>, vector<1x128xf32>
    %110 = arith.addf %103, %109 : vector<1x128xf32>
    %c2_i32 = arith.constant 2 : i32
    %111 = vector.broadcast %c2_i32 : i32 to vector<1x128xi32>
    %112 = arith.cmpi eq, %97, %111 : vector<1x128xi32>
    %cst_47 = arith.constant 0.000000e+00 : f32
    %113 = vector.shape_cast %86 : vector<1x1xf32> to vector<1x1xf32>
    %114 = vector.broadcast %113 : vector<1x1xf32> to vector<1x128xf32>
    %115 = vector.broadcast %cst_47 : f32 to vector<1x128xf32>
    %116 = arith.select %112, %114, %115 : vector<1x128xi1>, vector<1x128xf32>
    %117 = arith.addf %110, %116 : vector<1x128xf32>
    %c3_i32 = arith.constant 3 : i32
    %118 = vector.broadcast %c3_i32 : i32 to vector<1x128xi32>
    %119 = arith.cmpi eq, %97, %118 : vector<1x128xi32>
    %cst_48 = arith.constant 0.000000e+00 : f32
    %120 = vector.shape_cast %96 : vector<1x1xf32> to vector<1x1xf32>
    %121 = vector.broadcast %120 : vector<1x1xf32> to vector<1x128xf32>
    %122 = vector.broadcast %cst_48 : f32 to vector<1x128xf32>
    %123 = arith.select %119, %121, %122 : vector<1x128xi1>, vector<1x128xf32>
    %124 = arith.addf %117, %123 : vector<1x128xf32>
    %125 = vector.shape_cast %124 : vector<1x128xf32> to vector<1x1x128xf32>
    %c0_49 = arith.constant 0 : index
    %c0_50 = arith.constant 0 : index
    %c0_51 = arith.constant 0 : index
    %126 = vector.load %arg12[%c0_49, %c0_50, %c0_51] : memref<1x1x128xf32, #tpu.memory_space<vmem>>, vector<1x1x128xf32>
    tpu.vector_store %arg12[%c0_49, %c0_50, %c0_51], %125 {strides = array<i32>} : memref<1x1x128xf32, #tpu.memory_space<vmem>>, vector<1x1x128xf32>,
    return
  }
  func.func @transform_0(%arg0: i32) -> (i32, i32) {
    %c0_i32 = arith.constant 0 : i32
    %c0_i32_0 = arith.constant 0 : i32
    return %arg0, %c0_i32 : i32, i32
  }
  func.func @transform_1(%arg0: i32) -> (i32, i32) {
    %c0_i32 = arith.constant 0 : i32
    %c0_i32_0 = arith.constant 0 : i32
    return %arg0, %c0_i32 : i32, i32
  }
  func.func @transform_2(%arg0: i32) -> (i32, i32) {
    %c0_i32 = arith.constant 0 : i32
    %c0_i32_0 = arith.constant 0 : i32
    return %c0_i32, %arg0 : i32, i32
  }
  func.func @transform_3(%arg0: i32) -> (i32, i32) {
    %c0_i32 = arith.constant 0 : i32
    %c0_i32_0 = arith.constant 0 : i32
    return %c0_i32, %arg0 : i32, i32
  }
  func.func @transform_4(%arg0: i32) -> (i32, i32) {
    %c0_i32 = arith.constant 0 : i32
    %c0_i32_0 = arith.constant 0 : i32
    return %c0_i32, %arg0 : i32, i32
  }
  func.func @transform_5(%arg0: i32) -> (i32, i32) {
    %c0_i32 = arith.constant 0 : i32
    %c0_i32_0 = arith.constant 0 : i32
    %c0_i32_1 = arith.constant 0 : i32
    return %c0_i32, %c0_i32_0 : i32, i32
  }
  func.func @transform_6(%arg0: i32) -> (i32, i32) {
    %c0_i32 = arith.constant 0 : i32
    %c0_i32_0 = arith.constant 0 : i32
    %c0_i32_1 = arith.constant 0 : i32
    return %c0_i32, %c0_i32_0 : i32, i32
  }
  func.func @transform_7(%arg0: i32) -> (i32, i32) {
    %c0_i32 = arith.constant 0 : i32
    %c0_i32_0 = arith.constant 0 : i32
    %c0_i32_1 = arith.constant 0 : i32
    return %c0_i32, %c0_i32_0 : i32, i32
  }
  func.func @transform_8(%arg0: i32) -> (i32, i32) {
    %c0_i32 = arith.constant 0 : i32
    %c0_i32_0 = arith.constant 0 : i32
    %c0_i32_1 = arith.constant 0 : i32
    return %c0_i32, %c0_i32_0 : i32, i32
  }
  func.func @transform_9(%arg0: i32) -> (i32, i32) {
    %c0_i32 = arith.constant 0 : i32
    %c0_i32_0 = arith.constant 0 : i32
    %c0_i32_1 = arith.constant 0 : i32
    return %c0_i32, %c0_i32_0 : i32, i32
  }
  func.func @transform_10(%arg0: i32) -> (i32, i32) {
    %c0_i32 = arith.constant 0 : i32
    %c0_i32_0 = arith.constant 0 : i32
    %c0_i32_1 = arith.constant 0 : i32
    return %c0_i32, %c0_i32_0 : i32, i32
  }
  func.func @transform_11(%arg0: i32) -> (i32, i32, i32) {
    %c0_i32 = arith.constant 0 : i32
    %c0_i32_0 = arith.constant 0 : i32
    %c0_i32_1 = arith.constant 0 : i32
    return %arg0, %c0_i32, %c0_i32_0 : i32, i32, i32
  }
}

</mosaic_0001>

<llo_original>
// kernel: dann_loss.1
$region0: #{dann_loss.1}
  #allocation0 [shape = 'u32[]', space=smem, size = 0x4, offset = 0x4, fixed_abs, tag = 'smem constant byte address 0x4 - core index']
  #allocation1 [shape = 'u32[144,128]{1,0:T(1,128)}', space=vmem, size = 0x12000, scoped, tag = 'internal scratch']
  #allocation2 [shape = 'f32[1,1]{1,0:T(1,128)S(1)}', space=vmem, size = 0x200, scoped, tag = 'scoped memory for dann_loss.1']
  %s0 = inlined_call_operand.vmem [shape: bf16[128,32], index: 0, kind: input, shape index: {}]
  %s1 = inlined_call_operand.vmem [shape: bf16[128,32], index: 1, kind: input, shape index: {}]
  %s2 = inlined_call_operand.vmem [shape: f32[1,128], index: 2, kind: input, shape index: {}]
  %s3 = inlined_call_operand.vmem [shape: f32[1,128], index: 3, kind: input, shape index: {}]
  %s4 = inlined_call_operand.vmem [shape: f32[1,128], index: 4, kind: input, shape index: {}]
  %s5 = inlined_call_operand.vmem [shape: bf16[32,32], index: 5, kind: input, shape index: {}]
  %s6 = inlined_call_operand.vmem [shape: f32[1,32], index: 6, kind: input, shape index: {}]
  %s7 = inlined_call_operand.vmem [shape: bf16[32,32], index: 7, kind: input, shape index: {}]
  %s8 = inlined_call_operand.vmem [shape: f32[1,32], index: 8, kind: input, shape index: {}]
  %s9 = inlined_call_operand.vmem [shape: f32[1,32], index: 9, kind: input, shape index: {}]
  %s10 = inlined_call_operand.<no memory space> [shape: f32[1,1], index: 10, kind: input, shape index: {}]
  %s11 = inlined_call_operand.vmem [shape: f32[1,1,128], index: 11, kind: output, shape index: {}]
  %s12 = sld [smem:[#allocation0]]
  $region54: #{dann_loss.1} parent=0
    _
  %s14 = ssub.s32 1, %s12
  %s15 = scalar_select 0, %s14, %s12
  %v16 = vstv %s10
  %17 = vst [vmem:[#allocation2] sm:$0x1] %v16
  // Predicated region
  $region2: #{dann_loss.1} parent=0 // pred_check
    _
  $region3: #{dann_loss.1} parent=0 // pred_check_branch
    %19 = sbr.rel (0) target = $region5
  $region4: #{dann_loss.1} parent=0 // pred_region
    _
  $region5: #{dann_loss.1} parent=0 // pred_fallthru
    _
  // Predicated region
  $region6: #{dann_loss.1} parent=0 // pred_check
    _
  $region7: #{dann_loss.1} parent=0 // pred_check_branch
    %21 = sbr.rel (0) target = $region9
  $region8: #{dann_loss.1} parent=0 // pred_region
    _
  $region9: #{dann_loss.1} parent=0 // pred_fallthru
    _
  // Predicated region
  $region10: #{dann_loss.1} parent=0 // pred_check
    _
  $region11: #{dann_loss.1} parent=0 // pred_check_branch
    %23 = sbr.rel (0) target = $region13
  $region12: #{dann_loss.1} parent=0 // pred_region
    _
  $region13: #{dann_loss.1} parent=0 // pred_fallthru
    _
  // Predicated region
  $region14: #{dann_loss.1} parent=0 // pred_check
    _
  $region15: #{dann_loss.1} parent=0 // pred_check_branch
    %25 = sbr.rel (0) target = $region17
  $region16: #{dann_loss.1} parent=0 // pred_region
    _
  $region17: #{dann_loss.1} parent=0 // pred_fallthru
    _
  // Predicated region
  $region18: #{dann_loss.1} parent=0 // pred_check
    _
  $region19: #{dann_loss.1} parent=0 // pred_check_branch
    %27 = sbr.rel (0) target = $region21
  $region20: #{dann_loss.1} parent=0 // pred_region
    _
  $region21: #{dann_loss.1} parent=0 // pred_fallthru
    _
  // Predicated region
  $region22: #{dann_loss.1} parent=0 // pred_check
    _
  $region23: #{dann_loss.1} parent=0 // pred_check_branch
    %29 = sbr.rel (0) target = $region25
  $region24: #{dann_loss.1} parent=0 // pred_region
    _
  $region25: #{dann_loss.1} parent=0 // pred_fallthru
    _
  // Predicated region
  $region26: #{dann_loss.1} parent=0 // pred_check
    _
  $region27: #{dann_loss.1} parent=0 // pred_check_branch
    %31 = sbr.rel (0) target = $region29
  $region28: #{dann_loss.1} parent=0 // pred_region
    _
  $region29: #{dann_loss.1} parent=0 // pred_fallthru
    _
  // Predicated region
  $region30: #{dann_loss.1} parent=0 // pred_check
    _
  $region31: #{dann_loss.1} parent=0 // pred_check_branch
    %33 = sbr.rel (0) target = $region33
  $region32: #{dann_loss.1} parent=0 // pred_region
    _
  $region33: #{dann_loss.1} parent=0 // pred_fallthru
    _
  // Predicated region
  $region34: #{dann_loss.1} parent=0 // pred_check
    _
  $region35: #{dann_loss.1} parent=0 // pred_check_branch
    %35 = sbr.rel (0) target = $region37
  $region36: #{dann_loss.1} parent=0 // pred_region
    _
  $region37: #{dann_loss.1} parent=0 // pred_fallthru
    _
  // Predicated region
  $region38: #{dann_loss.1} parent=0 // pred_check
    _
  $region39: #{dann_loss.1} parent=0 // pred_check_branch
    %37 = sbr.rel (0) target = $region41
  $region40: #{dann_loss.1} parent=0 // pred_region
    _
  $region41: #{dann_loss.1} parent=0 // pred_fallthru
    _
  // Predicated region
  $region42: #{dann_loss.1} parent=0 // pred_check
    _
  $region43: #{dann_loss.1} parent=0 // pred_check_branch
    %39 = sbr.rel (0) target = $region45
  $region44: #{dann_loss.1} parent=0 // pred_region
    _
  $region45: #{dann_loss.1} parent=0 // pred_fallthru
    _
  %v41 = vld [vmem:[%s5] sm:$0xf]
  %v42 = vld [vmem:[%s5 + $0x4] sm:$0xf]
  %v43 = vld [vmem:[%s5 + $0x8] sm:$0xf]
  %v44 = vld [vmem:[%s5 + $0xc] sm:$0xf]
  %v45 = vld [vmem:[%s6] sm:$0x1]
  %v46 = vld [vmem:[%s7] sm:$0xf]
  %v47 = vld [vmem:[%s7 + $0x4] sm:$0xf]
  %v48 = vld [vmem:[%s7 + $0x8] sm:$0xf]
  %v49 = vld [vmem:[%s7 + $0xc] sm:$0xf]
  %v50 = vld [vmem:[%s8] sm:$0x1]
  %v51 = vld [vmem:[%s9] sm:$0x1]
  %v52 = vld [vmem:[#allocation2] sm:$0x1]
  %v53 = vld [vmem:[%s0] sm:$0xf]
  %v54 = vld [vmem:[%s0 + $0x4] sm:$0xf]
  %v55 = vld [vmem:[%s0 + $0x8] sm:$0xf]
  %v56 = vld [vmem:[%s0 + $0xc] sm:$0xf]
  %v57 = vld [vmem:[%s0 + $0x10] sm:$0xf]
  %v58 = vld [vmem:[%s0 + $0x14] sm:$0xf]
  %v59 = vld [vmem:[%s0 + $0x18] sm:$0xf]
  %v60 = vld [vmem:[%s0 + $0x1c] sm:$0xf]
  %v61 = vld [vmem:[%s0 + $0x20] sm:$0xf]
  %v62 = vld [vmem:[%s0 + $0x24] sm:$0xf]
  %v63 = vld [vmem:[%s0 + $0x28] sm:$0xf]
  %v64 = vld [vmem:[%s0 + $0x2c] sm:$0xf]
  %v65 = vld [vmem:[%s0 + $0x30] sm:$0xf]
  %v66 = vld [vmem:[%s0 + $0x34] sm:$0xf]
  %v67 = vld [vmem:[%s0 + $0x38] sm:$0xf]
  %v68 = vld [vmem:[%s0 + $0x3c] sm:$0xf]
  %v70 = vlaneseq
  %v71 = vshrl.u32 %v70, 7
  %v72 = vsub.s32 0, %v71
  %v73 = vrot.slane %v45, %v72
  %v91 = vunpack.c.l.b16 %v53
  %v92 = vunpack.c.l.b16 %v54
  %v93 = vunpack.c.l.b16 %v55
  %v94 = vunpack.c.l.b16 %v56
  %v95 = vunpack.c.l.b16 %v57
  %v96 = vunpack.c.l.b16 %v58
  %v97 = vunpack.c.l.b16 %v59
  %v98 = vunpack.c.l.b16 %v60
  %v99 = vunpack.c.l.b16 %v61
  %v100 = vunpack.c.l.b16 %v62
  %v101 = vunpack.c.l.b16 %v63
  %v102 = vunpack.c.l.b16 %v64
  %v103 = vunpack.c.l.b16 %v65
  %v104 = vunpack.c.l.b16 %v66
  %v105 = vunpack.c.l.b16 %v67
  %v106 = vunpack.c.l.b16 %v68
  %v107 = vpack.c.b16 %v92, %v91
  %v108 = vpack.c.b16 %v94, %v93
  %v109 = vpack.c.b16 %v96, %v95
  %v110 = vpack.c.b16 %v98, %v97
  %v111 = vpack.c.b16 %v100, %v99
  %v112 = vpack.c.b16 %v102, %v101
  %v113 = vpack.c.b16 %v104, %v103
  %v114 = vpack.c.b16 %v106, %v105
  %v119 = vunpack.c.l.b16 %v41
  %v120 = vunpack.c.l.b16 %v42
  %v121 = vunpack.c.l.b16 %v43
  %v122 = vunpack.c.l.b16 %v44
  %v123 = vpack.c.b16 %v120, %v119
  %v124 = vpack.c.b16 %v122, %v121
  %vm127 = vcmask 261120
  %v129 = vsel %vm127, %v107, 0
  %v132 = vsel %vm127, %v108, 0
  %v135 = vsel %vm127, %v109, 0
  %v138 = vsel %vm127, %v110, 0
  %v141 = vsel %vm127, %v111, 0
  %v144 = vsel %vm127, %v112, 0
  %v147 = vsel %vm127, %v113, 0
  %v150 = vsel %vm127, %v114, 0
  %152 = vmatprep.subr.bf16.mxu0 0
  %153 = vmatpush1.bf16.msra.mxu0 %v123
  %154 = vmatprep.subr.bf16.mxu0 0
  %155 = vmatpush1.bf16.msra.mxu0 %v124
  %156 = vmatprep.subr.bf16.mxu0 0
  %157 = vmatpush1.bf16.msra.mxu0 0
  %158 = vmatprep.subr.bf16.mxu0 0
  %159 = vmatpush1.bf16.msra.mxu0 0
  %160 = vmatprep.subr.bf16.mxu0 0
  %161 = vmatpush1.bf16.msra.mxu0 0
  %162 = vmatprep.subr.bf16.mxu0 0
  %163 = vmatpush1.bf16.msra.mxu0 0
  %164 = vmatprep.subr.bf16.mxu0 0
  %165 = vmatpush1.bf16.msra.mxu0 0
  %166 = vmatprep.subr.bf16.mxu0 0
  %167 = vmatpush1.bf16.msra.mxu0 0
  %168 = vmatprep.subr.bf16.mxu0 0
  %169 = vmatpush1.bf16.msra.mxu0 0
  %170 = vmatprep.subr.bf16.mxu0 0
  %171 = vmatpush1.bf16.msra.mxu0 0
  %172 = vmatprep.subr.bf16.mxu0 0
  %173 = vmatpush1.bf16.msra.mxu0 0
  %174 = vmatprep.subr.bf16.mxu0 0
  %175 = vmatpush1.bf16.msra.mxu0 0
  %176 = vmatprep.subr.bf16.mxu0 0
  %177 = vmatpush1.bf16.msra.mxu0 0
  %178 = vmatprep.subr.bf16.mxu0 0
  %179 = vmatpush1.bf16.msra.mxu0 0
  %180 = vmatprep.subr.bf16.mxu0 0
  %181 = vmatpush1.bf16.msra.mxu0 0
  %182 = vmatprep.subr.bf16.mxu0 0
  %183 = vmatpush1.bf16.msra.mxu0 0
  %184 = vmatprep.mubr.bf16.mxu0 0
  %185 = vmatmul.mubr.bf16.gmra.mrb[0].mxu0 %v129
  %v186 = vpop.f32.mrb[0].mxu0
  %v187 = vadd.f32 %v73, %v186
  %v188 = vpop.f32.mrb[0].mxu0
  %v189 = vpop.f32.mrb[0].mxu0
  %v190 = vadd.f32 %v73, %v189
  %v191 = vpop.f32.mrb[0].mxu0
  %192 = vmatprep.mubr.bf16.mxu0 0
  %193 = vmatmul.mubr.bf16.gmra.mrb[0].mxu0 %v132
  %v194 = vpop.f32.mrb[0].mxu0
  %v195 = vadd.f32 %v73, %v194
  %v196 = vpop.f32.mrb[0].mxu0
  %v197 = vpop.f32.mrb[0].mxu0
  %v198 = vadd.f32 %v73, %v197
  %v199 = vpop.f32.mrb[0].mxu0
  %200 = vmatprep.mubr.bf16.mxu0 0
  %201 = vmatmul.mubr.bf16.gmra.mrb[0].mxu0 %v135
  %v202 = vpop.f32.mrb[0].mxu0
  %v203 = vadd.f32 %v73, %v202
  %v204 = vpop.f32.mrb[0].mxu0
  %v205 = vpop.f32.mrb[0].mxu0
  %v206 = vadd.f32 %v73, %v205
  %v207 = vpop.f32.mrb[0].mxu0
  %208 = vmatprep.mubr.bf16.mxu0 0
  %209 = vmatmul.mubr.bf16.gmra.mrb[0].mxu0 %v138
  %v210 = vpop.f32.mrb[0].mxu0
  %v211 = vadd.f32 %v73, %v210
  %v212 = vpop.f32.mrb[0].mxu0
  %v213 = vpop.f32.mrb[0].mxu0
  %v214 = vadd.f32 %v73, %v213
  %v215 = vpop.f32.mrb[0].mxu0
  %216 = vmatprep.mubr.bf16.mxu0 0
  %217 = vmatmul.mubr.bf16.gmra.mrb[0].mxu0 %v141
  %v218 = vpop.f32.mrb[0].mxu0
  %v219 = vadd.f32 %v73, %v218
  %v220 = vpop.f32.mrb[0].mxu0
  %v221 = vpop.f32.mrb[0].mxu0
  %v222 = vadd.f32 %v73, %v221
  %v223 = vpop.f32.mrb[0].mxu0
  %224 = vmatprep.mubr.bf16.mxu0 0
  %225 = vmatmul.mubr.bf16.gmra.mrb[0].mxu0 %v144
  %v226 = vpop.f32.mrb[0].mxu0
  %v227 = vadd.f32 %v73, %v226
  %v228 = vpop.f32.mrb[0].mxu0
  %v229 = vpop.f32.mrb[0].mxu0
  %v230 = vadd.f32 %v73, %v229
  %v231 = vpop.f32.mrb[0].mxu0
  %232 = vmatprep.mubr.bf16.mxu0 0
  %233 = vmatmul.mubr.bf16.gmra.mrb[0].mxu0 %v147
  %v234 = vpop.f32.mrb[0].mxu0
  %v235 = vadd.f32 %v73, %v234
  %v236 = vpop.f32.mrb[0].mxu0
  %v237 = vpop.f32.mrb[0].mxu0
  %v238 = vadd.f32 %v73, %v237
  %v239 = vpop.f32.mrb[0].mxu0
  %240 = vmatprep.mubr.bf16.mxu0 0
  %241 = vmatmul.mubr.bf16.gmra.mrb[0].mxu0 %v150
  %v242 = vpop.f32.mrb[0].mxu0
  %v243 = vadd.f32 %v73, %v242
  %v244 = vpop.f32.mrb[0].mxu0
  %v245 = vpop.f32.mrb[0].mxu0
  %v246 = vadd.f32 %v73, %v245
  %v247 = vpop.f32.mrb[0].mxu0
  %248 = vdwg.mxu0
  %v249 = vmax.f32 %v187, 0.0
  %v250 = vmax.f32 %v190, 0.0
  %v251 = vmax.f32 %v195, 0.0
  %v252 = vmax.f32 %v198, 0.0
  %v253 = vmax.f32 %v203, 0.0
  %v254 = vmax.f32 %v206, 0.0
  %v255 = vmax.f32 %v211, 0.0
  %v256 = vmax.f32 %v214, 0.0
  %v257 = vmax.f32 %v219, 0.0
  %v258 = vmax.f32 %v222, 0.0
  %v259 = vmax.f32 %v227, 0.0
  %v260 = vmax.f32 %v230, 0.0
  %v261 = vmax.f32 %v235, 0.0
  %v262 = vmax.f32 %v238, 0.0
  %v263 = vmax.f32 %v243, 0.0
  %v264 = vmax.f32 %v246, 0.0
  %v265 = vpack.c.bf16 %v250, %v249
  %v266 = vpack.c.bf16 %v252, %v251
  %v267 = vpack.c.bf16 %v254, %v253
  %v268 = vpack.c.bf16 %v256, %v255
  %v269 = vpack.c.bf16 %v258, %v257
  %v270 = vpack.c.bf16 %v260, %v259
  %v271 = vpack.c.bf16 %v262, %v261
  %v272 = vpack.c.bf16 %v264, %v263
  %v274 = vlaneseq
  %v275 = vshrl.u32 %v274, 7
  %v276 = vsub.s32 0, %v275
  %v277 = vrot.slane %v50, %v276
  %v283 = vunpack.c.l.b16 %v46
  %v284 = vunpack.c.l.b16 %v47
  %v285 = vunpack.c.l.b16 %v48
  %v286 = vunpack.c.l.b16 %v49
  %v287 = vpack.c.b16 %v284, %v283
  %v288 = vpack.c.b16 %v286, %v285
  %v292 = vsel %vm127, %v265, 0
  %v295 = vsel %vm127, %v266, 0
  %v298 = vsel %vm127, %v267, 0
  %v301 = vsel %vm127, %v268, 0
  %v304 = vsel %vm127, %v269, 0
  %v307 = vsel %vm127, %v270, 0
  %v310 = vsel %vm127, %v271, 0
  %v313 = vsel %vm127, %v272, 0
  %315 = vmatprep.subr.bf16.mxu0 0
  %316 = vmatpush1.bf16.msra.mxu0 %v287
  %317 = vmatprep.subr.bf16.mxu0 0
  %318 = vmatpush1.bf16.msra.mxu0 %v288
  %319 = vmatprep.subr.bf16.mxu0 0
  %320 = vmatpush1.bf16.msra.mxu0 0
  %321 = vmatprep.subr.bf16.mxu0 0
  %322 = vmatpush1.bf16.msra.mxu0 0
  %323 = vmatprep.subr.bf16.mxu0 0
  %324 = vmatpush1.bf16.msra.mxu0 0
  %325 = vmatprep.subr.bf16.mxu0 0
  %326 = vmatpush1.bf16.msra.mxu0 0
  %327 = vmatprep.subr.bf16.mxu0 0
  %328 = vmatpush1.bf16.msra.mxu0 0
  %329 = vmatprep.subr.bf16.mxu0 0
  %330 = vmatpush1.bf16.msra.mxu0 0
  %331 = vmatprep.subr.bf16.mxu0 0
  %332 = vmatpush1.bf16.msra.mxu0 0
  %333 = vmatprep.subr.bf16.mxu0 0
  %334 = vmatpush1.bf16.msra.mxu0 0
  %335 = vmatprep.subr.bf16.mxu0 0
  %336 = vmatpush1.bf16.msra.mxu0 0
  %337 = vmatprep.subr.bf16.mxu0 0
  %338 = vmatpush1.bf16.msra.mxu0 0
  %339 = vmatprep.subr.bf16.mxu0 0
  %340 = vmatpush1.bf16.msra.mxu0 0
  %341 = vmatprep.subr.bf16.mxu0 0
  %342 = vmatpush1.bf16.msra.mxu0 0
  %343 = vmatprep.subr.bf16.mxu0 0
  %344 = vmatpush1.bf16.msra.mxu0 0
  %345 = vmatprep.subr.bf16.mxu0 0
  %346 = vmatpush1.bf16.msra.mxu0 0
  %347 = vmatprep.mubr.bf16.mxu0 0
  %348 = vmatmul.mubr.bf16.gmra.mrb[0].mxu0 %v292
  %v349 = vpop.f32.mrb[0].mxu0
  %v350 = vadd.f32 %v277, %v349
  %v351 = vpop.f32.mrb[0].mxu0
  %v352 = vpop.f32.mrb[0].mxu0
  %v353 = vadd.f32 %v277, %v352
  %v354 = vpop.f32.mrb[0].mxu0
  %355 = vmatprep.mubr.bf16.mxu0 0
  %356 = vmatmul.mubr.bf16.gmra.mrb[0].mxu0 %v295
  %v357 = vpop.f32.mrb[0].mxu0
  %v358 = vadd.f32 %v277, %v357
  %v359 = vpop.f32.mrb[0].mxu0
  %v360 = vpop.f32.mrb[0].mxu0
  %v361 = vadd.f32 %v277, %v360
  %v362 = vpop.f32.mrb[0].mxu0
  %363 = vmatprep.mubr.bf16.mxu0 0
  %364 = vmatmul.mubr.bf16.gmra.mrb[0].mxu0 %v298
  %v365 = vpop.f32.mrb[0].mxu0
  %v366 = vadd.f32 %v277, %v365
  %v367 = vpop.f32.mrb[0].mxu0
  %v368 = vpop.f32.mrb[0].mxu0
  %v369 = vadd.f32 %v277, %v368
  %v370 = vpop.f32.mrb[0].mxu0
  %371 = vmatprep.mubr.bf16.mxu0 0
  %372 = vmatmul.mubr.bf16.gmra.mrb[0].mxu0 %v301
  %v373 = vpop.f32.mrb[0].mxu0
  %v374 = vadd.f32 %v277, %v373
  %v375 = vpop.f32.mrb[0].mxu0
  %v376 = vpop.f32.mrb[0].mxu0
  %v377 = vadd.f32 %v277, %v376
  %v378 = vpop.f32.mrb[0].mxu0
  %379 = vmatprep.mubr.bf16.mxu0 0
  %380 = vmatmul.mubr.bf16.gmra.mrb[0].mxu0 %v304
  %v381 = vpop.f32.mrb[0].mxu0
  %v382 = vadd.f32 %v277, %v381
  %v383 = vpop.f32.mrb[0].mxu0
  %v384 = vpop.f32.mrb[0].mxu0
  %v385 = vadd.f32 %v277, %v384
  %v386 = vpop.f32.mrb[0].mxu0
  %387 = vmatprep.mubr.bf16.mxu0 0
  %388 = vmatmul.mubr.bf16.gmra.mrb[0].mxu0 %v307
  %v389 = vpop.f32.mrb[0].mxu0
  %v390 = vadd.f32 %v277, %v389
  %v391 = vpop.f32.mrb[0].mxu0
  %v392 = vpop.f32.mrb[0].mxu0
  %v393 = vadd.f32 %v277, %v392
  %v394 = vpop.f32.mrb[0].mxu0
  %395 = vmatprep.mubr.bf16.mxu0 0
  %396 = vmatmul.mubr.bf16.gmra.mrb[0].mxu0 %v310
  %v397 = vpop.f32.mrb[0].mxu0
  %v398 = vadd.f32 %v277, %v397
  %v399 = vpop.f32.mrb[0].mxu0
  %v400 = vpop.f32.mrb[0].mxu0
  %v401 = vadd.f32 %v277, %v400
  %v402 = vpop.f32.mrb[0].mxu0
  %403 = vmatprep.mubr.bf16.mxu0 0
  %404 = vmatmul.mubr.bf16.gmra.mrb[0].mxu0 %v313
  %v405 = vpop.f32.mrb[0].mxu0
  %v406 = vadd.f32 %v277, %v405
  %v407 = vpop.f32.mrb[0].mxu0
  %v408 = vpop.f32.mrb[0].mxu0
  %v409 = vadd.f32 %v277, %v408
  %v410 = vpop.f32.mrb[0].mxu0
  %411 = vdwg.mxu0
  %v412 = vmax.f32 %v350, 0.0
  %v413 = vmax.f32 %v353, 0.0
  %v414 = vmax.f32 %v358, 0.0
  %v415 = vmax.f32 %v361, 0.0
  %v416 = vmax.f32 %v366, 0.0
  %v417 = vmax.f32 %v369, 0.0
  %v418 = vmax.f32 %v374, 0.0
  %v419 = vmax.f32 %v377, 0.0
  %v420 = vmax.f32 %v382, 0.0
  %v421 = vmax.f32 %v385, 0.0
  %v422 = vmax.f32 %v390, 0.0
  %v423 = vmax.f32 %v393, 0.0
  %v424 = vmax.f32 %v398, 0.0
  %v425 = vmax.f32 %v401, 0.0
  %v426 = vmax.f32 %v406, 0.0
  %v427 = vmax.f32 %v409, 0.0
  %429 = vset.pattern.permute.xlu0 0
  %430 = vperm.xlu0 %429, %v52
  %v431 = vpop.permute.xlu0 %430
  %v433 = vlaneseq
  %v434 = vshrl.u32 %v433, 7
  %v435 = vsub.s32 0, %v434
  %v436 = vrot.slane %v431, %v435
  %v438 = vsel %vm127, %v51, 0
  %v441 = vsel %vm127, %v412, 0
  %v444 = vsel %vm127, %v413, 0
  %v447 = vsel %vm127, %v414, 0
  %v450 = vsel %vm127, %v415, 0
  %v453 = vsel %vm127, %v416, 0
  %v456 = vsel %vm127, %v417, 0
  %v459 = vsel %vm127, %v418, 0
  %v462 = vsel %vm127, %v419, 0
  %v465 = vsel %vm127, %v420, 0
  %v468 = vsel %vm127, %v421, 0
  %v471 = vsel %vm127, %v422, 0
  %v474 = vsel %vm127, %v423, 0
  %v477 = vsel %vm127, %v424, 0
  %v480 = vsel %vm127, %v425, 0
  %v483 = vsel %vm127, %v426, 0
  %v486 = vsel %vm127, %v427, 0
  %488 = vmatprep.subr.mxu0 0.0
  %489 = vmatpush1.xpose.msra.mxu0 %v441
  %490 = vmatprep.subr.mxu0 0.0
  %491 = vmatpush1.xpose.msra.mxu0 %v444
  %492 = vmatprep.subr.mxu0 0.0
  %493 = vmatpush1.xpose.msra.mxu0 %v447
  %494 = vmatprep.subr.mxu0 0.0
  %495 = vmatpush1.xpose.msra.mxu0 %v450
  %496 = vmatprep.subr.mxu0 0.0
  %497 = vmatpush1.xpose.msra.mxu0 %v453
  %498 = vmatprep.subr.mxu0 0.0
  %499 = vmatpush1.xpose.msra.mxu0 %v456
  %500 = vmatprep.subr.mxu0 0.0
  %501 = vmatpush1.xpose.msra.mxu0 %v459
  %502 = vmatprep.subr.mxu0 0.0
  %503 = vmatpush1.xpose.msra.mxu0 %v462
  %504 = vmatprep.subr.mxu0 0.0
  %505 = vmatpush1.xpose.msra.mxu0 %v465
  %506 = vmatprep.subr.mxu0 0.0
  %507 = vmatpush1.xpose.msra.mxu0 %v468
  %508 = vmatprep.subr.mxu0 0.0
  %509 = vmatpush1.xpose.msra.mxu0 %v471
  %510 = vmatprep.subr.mxu0 0.0
  %511 = vmatpush1.xpose.msra.mxu0 %v474
  %512 = vmatprep.subr.mxu0 0.0
  %513 = vmatpush1.xpose.msra.mxu0 %v477
  %514 = vmatprep.subr.mxu0 0.0
  %515 = vmatpush1.xpose.msra.mxu0 %v480
  %516 = vmatprep.subr.mxu0 0.0
  %517 = vmatpush1.xpose.msra.mxu0 %v483
  %518 = vmatprep.subr.mxu0 0.0
  %519 = vmatpush1.xpose.msra.mxu0 %v486
  %520 = vmatprep.subr.mxu0 0.0
  %521 = vmatpush1.xpose.msra.mxu0 0.0
  %522 = vmatprep.subr.mxu0 0.0
  %523 = vmatpush1.xpose.msra.mxu0 0.0
  %524 = vmatprep.subr.mxu0 0.0
  %525 = vmatpush1.xpose.msra.mxu0 0.0
  %526 = vmatprep.subr.mxu0 0.0
  %527 = vmatpush1.xpose.msra.mxu0 0.0
  %528 = vmatprep.subr.mxu0 0.0
  %529 = vmatpush1.xpose.msra.mxu0 0.0
  %530 = vmatprep.subr.mxu0 0.0
  %531 = vmatpush1.xpose.msra.mxu0 0.0
  %532 = vmatprep.subr.mxu0 0.0
  %533 = vmatpush1.xpose.msra.mxu0 0.0
  %534 = vmatprep.subr.mxu0 0.0
  %535 = vmatpush1.xpose.msra.mxu0 0.0
  %536 = vmatprep.subr.mxu0 0.0
  %537 = vmatpush1.xpose.msra.mxu0 0.0
  %538 = vmatprep.subr.mxu0 0.0
  %539 = vmatpush1.xpose.msra.mxu0 0.0
  %540 = vmatprep.subr.mxu0 0.0
  %541 = vmatpush1.xpose.msra.mxu0 0.0
  %542 = vmatprep.subr.mxu0 0.0
  %543 = vmatpush1.xpose.msra.mxu0 0.0
  %544 = vmatprep.subr.mxu0 0.0
  %545 = vmatpush1.xpose.msra.mxu0 0.0
  %546 = vmatprep.subr.mxu0 0.0
  %547 = vmatpush1.xpose.msra.mxu0 0.0
  %548 = vmatprep.subr.mxu0 0.0
  %549 = vmatpush1.xpose.msra.mxu0 0.0
  %550 = vmatprep.subr.mxu0 0.0
  %551 = vmatpush1.xpose.msra.mxu0 0.0
  %552 = vmatprep.mubr.f32.mxu0 0.0
  %553 = vmatmul.mubr.f32.gmra.mrb[0].mxu0 %v438
  %v554 = vpop.f32.mrb[0].mxu0
  %v555 = vadd.f32 %v436, %v554
  %v556 = vpop.f32.mrb[0].mxu0
  %557 = vdwg.mxu0
  %v558 = vld [vmem:[%s1] sm:$0xf]
  %v559 = vld [vmem:[%s1 + $0x4] sm:$0xf]
  %v560 = vld [vmem:[%s1 + $0x8] sm:$0xf]
  %v561 = vld [vmem:[%s1 + $0xc] sm:$0xf]
  %v562 = vld [vmem:[%s1 + $0x10] sm:$0xf]
  %v563 = vld [vmem:[%s1 + $0x14] sm:$0xf]
  %v564 = vld [vmem:[%s1 + $0x18] sm:$0xf]
  %v565 = vld [vmem:[%s1 + $0x1c] sm:$0xf]
  %v566 = vld [vmem:[%s1 + $0x20] sm:$0xf]
  %v567 = vld [vmem:[%s1 + $0x24] sm:$0xf]
  %v568 = vld [vmem:[%s1 + $0x28] sm:$0xf]
  %v569 = vld [vmem:[%s1 + $0x2c] sm:$0xf]
  %v570 = vld [vmem:[%s1 + $0x30] sm:$0xf]
  %v571 = vld [vmem:[%s1 + $0x34] sm:$0xf]
  %v572 = vld [vmem:[%s1 + $0x38] sm:$0xf]
  %v573 = vld [vmem:[%s1 + $0x3c] sm:$0xf]
  %v590 = vunpack.c.l.b16 %v558
  %v591 = vunpack.c.l.b16 %v559
  %v592 = vunpack.c.l.b16 %v560
  %v593 = vunpack.c.l.b16 %v561
  %v594 = vunpack.c.l.b16 %v562
  %v595 = vunpack.c.l.b16 %v563
  %v596 = vunpack.c.l.b16 %v564
  %v597 = vunpack.c.l.b16 %v565
  %v598 = vunpack.c.l.b16 %v566
  %v599 = vunpack.c.l.b16 %v567
  %v600 = vunpack.c.l.b16 %v568
  %v601 = vunpack.c.l.b16 %v569
  %v602 = vunpack.c.l.b16 %v570
  %v603 = vunpack.c.l.b16 %v571
  %v604 = vunpack.c.l.b16 %v572
  %v605 = vunpack.c.l.b16 %v573
  %v606 = vpack.c.b16 %v591, %v590
  %v607 = vpack.c.b16 %v593, %v592
  %v608 = vpack.c.b16 %v595, %v594
  %v609 = vpack.c.b16 %v597, %v596
  %v610 = vpack.c.b16 %v599, %v598
  %v611 = vpack.c.b16 %v601, %v600
  %v612 = vpack.c.b16 %v603, %v602
  %v613 = vpack.c.b16 %v605, %v604
  %v615 = vsel %vm127, %v606, 0
  %v618 = vsel %vm127, %v607, 0
  %v621 = vsel %vm127, %v608, 0
  %v624 = vsel %vm127, %v609, 0
  %v627 = vsel %vm127, %v610, 0
  %v630 = vsel %vm127, %v611, 0
  %v633 = vsel %vm127, %v612, 0
  %v636 = vsel %vm127, %v613, 0
  %638 = vmatprep.subr.bf16.mxu0 0
  %639 = vmatpush1.bf16.msra.mxu0 %v123
  %640 = vmatprep.subr.bf16.mxu0 0
  %641 = vmatpush1.bf16.msra.mxu0 %v124
  %642 = vmatprep.subr.bf16.mxu0 0
  %643 = vmatpush1.bf16.msra.mxu0 0
  %644 = vmatprep.subr.bf16.mxu0 0
  %645 = vmatpush1.bf16.msra.mxu0 0
  %646 = vmatprep.subr.bf16.mxu0 0
  %647 = vmatpush1.bf16.msra.mxu0 0
  %648 = vmatprep.subr.bf16.mxu0 0
  %649 = vmatpush1.bf16.msra.mxu0 0
  %650 = vmatprep.subr.bf16.mxu0 0
  %651 = vmatpush1.bf16.msra.mxu0 0
  %652 = vmatprep.subr.bf16.mxu0 0
  %653 = vmatpush1.bf16.msra.mxu0 0
  %654 = vmatprep.subr.bf16.mxu0 0
  %655 = vmatpush1.bf16.msra.mxu0 0
  %656 = vmatprep.subr.bf16.mxu0 0
  %657 = vmatpush1.bf16.msra.mxu0 0
  %658 = vmatprep.subr.bf16.mxu0 0
  %659 = vmatpush1.bf16.msra.mxu0 0
  %660 = vmatprep.subr.bf16.mxu0 0
  %661 = vmatpush1.bf16.msra.mxu0 0
  %662 = vmatprep.subr.bf16.mxu0 0
  %663 = vmatpush1.bf16.msra.mxu0 0
  %664 = vmatprep.subr.bf16.mxu0 0
  %665 = vmatpush1.bf16.msra.mxu0 0
  %666 = vmatprep.subr.bf16.mxu0 0
  %667 = vmatpush1.bf16.msra.mxu0 0
  %668 = vmatprep.subr.bf16.mxu0 0
  %669 = vmatpush1.bf16.msra.mxu0 0
  %670 = vmatprep.mubr.bf16.mxu0 0
  %671 = vmatmul.mubr.bf16.gmra.mrb[0].mxu0 %v615
  %v672 = vpop.f32.mrb[0].mxu0
  %v673 = vadd.f32 %v73, %v672
  %v674 = vpop.f32.mrb[0].mxu0
  %v675 = vpop.f32.mrb[0].mxu0
  %v676 = vadd.f32 %v73, %v675
  %v677 = vpop.f32.mrb[0].mxu0
  %678 = vmatprep.mubr.bf16.mxu0 0
  %679 = vmatmul.mubr.bf16.gmra.mrb[0].mxu0 %v618
  %v680 = vpop.f32.mrb[0].mxu0
  %v681 = vadd.f32 %v73, %v680
  %v682 = vpop.f32.mrb[0].mxu0
  %v683 = vpop.f32.mrb[0].mxu0
  %v684 = vadd.f32 %v73, %v683
  %v685 = vpop.f32.mrb[0].mxu0
  %686 = vmatprep.mubr.bf16.mxu0 0
  %687 = vmatmul.mubr.bf16.gmra.mrb[0].mxu0 %v621
  %v688 = vpop.f32.mrb[0].mxu0
  %v689 = vadd.f32 %v73, %v688
  %v690 = vpop.f32.mrb[0].mxu0
  %v691 = vpop.f32.mrb[0].mxu0
  %v692 = vadd.f32 %v73, %v691
  %v693 = vpop.f32.mrb[0].mxu0
  %694 = vmatprep.mubr.bf16.mxu0 0
  %695 = vmatmul.mubr.bf16.gmra.mrb[0].mxu0 %v624
  %v696 = vpop.f32.mrb[0].mxu0
  %v697 = vadd.f32 %v73, %v696
  %v698 = vpop.f32.mrb[0].mxu0
  %v699 = vpop.f32.mrb[0].mxu0
  %v700 = vadd.f32 %v73, %v699
  %v701 = vpop.f32.mrb[0].mxu0
  %702 = vmatprep.mubr.bf16.mxu0 0
  %703 = vmatmul.mubr.bf16.gmra.mrb[0].mxu0 %v627
  %v704 = vpop.f32.mrb[0].mxu0
  %v705 = vadd.f32 %v73, %v704
  %v706 = vpop.f32.mrb[0].mxu0
  %v707 = vpop.f32.mrb[0].mxu0
  %v708 = vadd.f32 %v73, %v707
  %v709 = vpop.f32.mrb[0].mxu0
  %710 = vmatprep.mubr.bf16.mxu0 0
  %711 = vmatmul.mubr.bf16.gmra.mrb[0].mxu0 %v630
  %v712 = vpop.f32.mrb[0].mxu0
  %v713 = vadd.f32 %v73, %v712
  %v714 = vpop.f32.mrb[0].mxu0
  %v715 = vpop.f32.mrb[0].mxu0
  %v716 = vadd.f32 %v73, %v715
  %v717 = vpop.f32.mrb[0].mxu0
  %718 = vmatprep.mubr.bf16.mxu0 0
  %719 = vmatmul.mubr.bf16.gmra.mrb[0].mxu0 %v633
  %v720 = vpop.f32.mrb[0].mxu0
  %v721 = vadd.f32 %v73, %v720
  %v722 = vpop.f32.mrb[0].mxu0
  %v723 = vpop.f32.mrb[0].mxu0
  %v724 = vadd.f32 %v73, %v723
  %v725 = vpop.f32.mrb[0].mxu0
  %726 = vmatprep.mubr.bf16.mxu0 0
  %727 = vmatmul.mubr.bf16.gmra.mrb[0].mxu0 %v636
  %v728 = vpop.f32.mrb[0].mxu0
  %v729 = vadd.f32 %v73, %v728
  %v730 = vpop.f32.mrb[0].mxu0
  %v731 = vpop.f32.mrb[0].mxu0
  %v732 = vadd.f32 %v73, %v731
  %v733 = vpop.f32.mrb[0].mxu0
  %734 = vdwg.mxu0
  %v735 = vmax.f32 %v673, 0.0
  %v736 = vmax.f32 %v676, 0.0
  %v737 = vmax.f32 %v681, 0.0
  %v738 = vmax.f32 %v684, 0.0
  %v739 = vmax.f32 %v689, 0.0
  %v740 = vmax.f32 %v692, 0.0
  %v741 = vmax.f32 %v697, 0.0
  %v742 = vmax.f32 %v700, 0.0
  %v743 = vmax.f32 %v705, 0.0
  %v744 = vmax.f32 %v708, 0.0
  %v745 = vmax.f32 %v713, 0.0
  %v746 = vmax.f32 %v716, 0.0
  %v747 = vmax.f32 %v721, 0.0
  %v748 = vmax.f32 %v724, 0.0
  %v749 = vmax.f32 %v729, 0.0
  %v750 = vmax.f32 %v732, 0.0
  %v751 = vpack.c.bf16 %v736, %v735
  %v752 = vpack.c.bf16 %v738, %v737
  %v753 = vpack.c.bf16 %v740, %v739
  %v754 = vpack.c.bf16 %v742, %v741
  %v755 = vpack.c.bf16 %v744, %v743
  %v756 = vpack.c.bf16 %v746, %v745
  %v757 = vpack.c.bf16 %v748, %v747
  %v758 = vpack.c.bf16 %v750, %v749
  %v760 = vsel %vm127, %v751, 0
  %v763 = vsel %vm127, %v752, 0
  %v766 = vsel %vm127, %v753, 0
  %v769 = vsel %vm127, %v754, 0
  %v772 = vsel %vm127, %v755, 0
  %v775 = vsel %vm127, %v756, 0
  %v778 = vsel %vm127, %v757, 0
  %v781 = vsel %vm127, %v758, 0
  %783 = vmatprep.subr.bf16.mxu0 0
  %784 = vmatpush1.bf16.msra.mxu0 %v287
  %785 = vmatprep.subr.bf16.mxu0 0
  %786 = vmatpush1.bf16.msra.mxu0 %v288
  %787 = vmatprep.subr.bf16.mxu0 0
  %788 = vmatpush1.bf16.msra.mxu0 0
  %789 = vmatprep.subr.bf16.mxu0 0
  %790 = vmatpush1.bf16.msra.mxu0 0
  %791 = vmatprep.subr.bf16.mxu0 0
  %792 = vmatpush1.bf16.msra.mxu0 0
  %793 = vmatprep.subr.bf16.mxu0 0
  %794 = vmatpush1.bf16.msra.mxu0 0
  %795 = vmatprep.subr.bf16.mxu0 0
  %796 = vmatpush1.bf16.msra.mxu0 0
  %797 = vmatprep.subr.bf16.mxu0 0
  %798 = vmatpush1.bf16.msra.mxu0 0
  %799 = vmatprep.subr.bf16.mxu0 0
  %800 = vmatpush1.bf16.msra.mxu0 0
  %801 = vmatprep.subr.bf16.mxu0 0
  %802 = vmatpush1.bf16.msra.mxu0 0
  %803 = vmatprep.subr.bf16.mxu0 0
  %804 = vmatpush1.bf16.msra.mxu0 0
  %805 = vmatprep.subr.bf16.mxu0 0
  %806 = vmatpush1.bf16.msra.mxu0 0
  %807 = vmatprep.subr.bf16.mxu0 0
  %808 = vmatpush1.bf16.msra.mxu0 0
  %809 = vmatprep.subr.bf16.mxu0 0
  %810 = vmatpush1.bf16.msra.mxu0 0
  %811 = vmatprep.subr.bf16.mxu0 0
  %812 = vmatpush1.bf16.msra.mxu0 0
  %813 = vmatprep.subr.bf16.mxu0 0
  %814 = vmatpush1.bf16.msra.mxu0 0
  %815 = vmatprep.mubr.bf16.mxu0 0
  %816 = vmatmul.mubr.bf16.gmra.mrb[0].mxu0 %v760
  %v817 = vpop.f32.mrb[0].mxu0
  %v818 = vadd.f32 %v277, %v817
  %v819 = vpop.f32.mrb[0].mxu0
  %v820 = vpop.f32.mrb[0].mxu0
  %v821 = vadd.f32 %v277, %v820
  %v822 = vpop.f32.mrb[0].mxu0
  %823 = vmatprep.mubr.bf16.mxu0 0
  %824 = vmatmul.mubr.bf16.gmra.mrb[0].mxu0 %v763
  %v825 = vpop.f32.mrb[0].mxu0
  %v826 = vadd.f32 %v277, %v825
  %v827 = vpop.f32.mrb[0].mxu0
  %v828 = vpop.f32.mrb[0].mxu0
  %v829 = vadd.f32 %v277, %v828
  %v830 = vpop.f32.mrb[0].mxu0
  %831 = vmatprep.mubr.bf16.mxu0 0
  %832 = vmatmul.mubr.bf16.gmra.mrb[0].mxu0 %v766
  %v833 = vpop.f32.mrb[0].mxu0
  %v834 = vadd.f32 %v277, %v833
  %v835 = vpop.f32.mrb[0].mxu0
  %v836 = vpop.f32.mrb[0].mxu0
  %v837 = vadd.f32 %v277, %v836
  %v838 = vpop.f32.mrb[0].mxu0
  %839 = vmatprep.mubr.bf16.mxu0 0
  %840 = vmatmul.mubr.bf16.gmra.mrb[0].mxu0 %v769
  %v841 = vpop.f32.mrb[0].mxu0
  %v842 = vadd.f32 %v277, %v841
  %v843 = vpop.f32.mrb[0].mxu0
  %v844 = vpop.f32.mrb[0].mxu0
  %v845 = vadd.f32 %v277, %v844
  %v846 = vpop.f32.mrb[0].mxu0
  %847 = vmatprep.mubr.bf16.mxu0 0
  %848 = vmatmul.mubr.bf16.gmra.mrb[0].mxu0 %v772
  %v849 = vpop.f32.mrb[0].mxu0
  %v850 = vadd.f32 %v277, %v849
  %v851 = vpop.f32.mrb[0].mxu0
  %v852 = vpop.f32.mrb[0].mxu0
  %v853 = vadd.f32 %v277, %v852
  %v854 = vpop.f32.mrb[0].mxu0
  %855 = vmatprep.mubr.bf16.mxu0 0
  %856 = vmatmul.mubr.bf16.gmra.mrb[0].mxu0 %v775
  %v857 = vpop.f32.mrb[0].mxu0
  %v858 = vadd.f32 %v277, %v857
  %v859 = vpop.f32.mrb[0].mxu0
  %v860 = vpop.f32.mrb[0].mxu0
  %v861 = vadd.f32 %v277, %v860
  %v862 = vpop.f32.mrb[0].mxu0
  %863 = vmatprep.mubr.bf16.mxu0 0
  %864 = vmatmul.mubr.bf16.gmra.mrb[0].mxu0 %v778
  %v865 = vpop.f32.mrb[0].mxu0
  %v866 = vadd.f32 %v277, %v865
  %v867 = vpop.f32.mrb[0].mxu0
  %v868 = vpop.f32.mrb[0].mxu0
  %v869 = vadd.f32 %v277, %v868
  %v870 = vpop.f32.mrb[0].mxu0
  %871 = vmatprep.mubr.bf16.mxu0 0
  %872 = vmatmul.mubr.bf16.gmra.mrb[0].mxu0 %v781
  %v873 = vpop.f32.mrb[0].mxu0
  %v874 = vadd.f32 %v277, %v873
  %v875 = vpop.f32.mrb[0].mxu0
  %v876 = vpop.f32.mrb[0].mxu0
  %v877 = vadd.f32 %v277, %v876
  %v878 = vpop.f32.mrb[0].mxu0
  %879 = vdwg.mxu0
  %v880 = vmax.f32 %v818, 0.0
  %v881 = vmax.f32 %v821, 0.0
  %v882 = vmax.f32 %v826, 0.0
  %v883 = vmax.f32 %v829, 0.0
  %v884 = vmax.f32 %v834, 0.0
  %v885 = vmax.f32 %v837, 0.0
  %v886 = vmax.f32 %v842, 0.0
  %v887 = vmax.f32 %v845, 0.0
  %v888 = vmax.f32 %v850, 0.0
  %v889 = vmax.f32 %v853, 0.0
  %v890 = vmax.f32 %v858, 0.0
  %v891 = vmax.f32 %v861, 0.0
  %v892 = vmax.f32 %v866, 0.0
  %v893 = vmax.f32 %v869, 0.0
  %v894 = vmax.f32 %v874, 0.0
  %v895 = vmax.f32 %v877, 0.0
  %v897 = vsel %vm127, %v880, 0
  %v900 = vsel %vm127, %v881, 0
  %v903 = vsel %vm127, %v882, 0
  %v906 = vsel %vm127, %v883, 0
  %v909 = vsel %vm127, %v884, 0
  %v912 = vsel %vm127, %v885, 0
  %v915 = vsel %vm127, %v886, 0
  %v918 = vsel %vm127, %v887, 0
  %v921 = vsel %vm127, %v888, 0
  %v924 = vsel %vm127, %v889, 0
  %v927 = vsel %vm127, %v890, 0
  %v930 = vsel %vm127, %v891, 0
  %v933 = vsel %vm127, %v892, 0
  %v936 = vsel %vm127, %v893, 0
  %v939 = vsel %vm127, %v894, 0
  %v942 = vsel %vm127, %v895, 0
  %944 = vmatprep.subr.mxu0 0.0
  %945 = vmatpush1.xpose.msra.mxu0 %v897
  %946 = vmatprep.subr.mxu0 0.0
  %947 = vmatpush1.xpose.msra.mxu0 %v900
  %948 = vmatprep.subr.mxu0 0.0
  %949 = vmatpush1.xpose.msra.mxu0 %v903
  %950 = vmatprep.subr.mxu0 0.0
  %951 = vmatpush1.xpose.msra.mxu0 %v906
  %952 = vmatprep.subr.mxu0 0.0
  %953 = vmatpush1.xpose.msra.mxu0 %v909
  %954 = vmatprep.subr.mxu0 0.0
  %955 = vmatpush1.xpose.msra.mxu0 %v912
  %956 = vmatprep.subr.mxu0 0.0
  %957 = vmatpush1.xpose.msra.mxu0 %v915
  %958 = vmatprep.subr.mxu0 0.0
  %959 = vmatpush1.xpose.msra.mxu0 %v918
  %960 = vmatprep.subr.mxu0 0.0
  %961 = vmatpush1.xpose.msra.mxu0 %v921
  %962 = vmatprep.subr.mxu0 0.0
  %963 = vmatpush1.xpose.msra.mxu0 %v924
  %964 = vmatprep.subr.mxu0 0.0
  %965 = vmatpush1.xpose.msra.mxu0 %v927
  %966 = vmatprep.subr.mxu0 0.0
  %967 = vmatpush1.xpose.msra.mxu0 %v930
  %968 = vmatprep.subr.mxu0 0.0
  %969 = vmatpush1.xpose.msra.mxu0 %v933
  %970 = vmatprep.subr.mxu0 0.0
  %971 = vmatpush1.xpose.msra.mxu0 %v936
  %972 = vmatprep.subr.mxu0 0.0
  %973 = vmatpush1.xpose.msra.mxu0 %v939
  %974 = vmatprep.subr.mxu0 0.0
  %975 = vmatpush1.xpose.msra.mxu0 %v942
  %976 = vmatprep.subr.mxu0 0.0
  %977 = vmatpush1.xpose.msra.mxu0 0.0
  %978 = vmatprep.subr.mxu0 0.0
  %979 = vmatpush1.xpose.msra.mxu0 0.0
  %980 = vmatprep.subr.mxu0 0.0
  %981 = vmatpush1.xpose.msra.mxu0 0.0
  %982 = vmatprep.subr.mxu0 0.0
  %983 = vmatpush1.xpose.msra.mxu0 0.0
  %984 = vmatprep.subr.mxu0 0.0
  %985 = vmatpush1.xpose.msra.mxu0 0.0
  %986 = vmatprep.subr.mxu0 0.0
  %987 = vmatpush1.xpose.msra.mxu0 0.0
  %988 = vmatprep.subr.mxu0 0.0
  %989 = vmatpush1.xpose.msra.mxu0 0.0
  %990 = vmatprep.subr.mxu0 0.0
  %991 = vmatpush1.xpose.msra.mxu0 0.0
  %992 = vmatprep.subr.mxu0 0.0
  %993 = vmatpush1.xpose.msra.mxu0 0.0
  %994 = vmatprep.subr.mxu0 0.0
  %995 = vmatpush1.xpose.msra.mxu0 0.0
  %996 = vmatprep.subr.mxu0 0.0
  %997 = vmatpush1.xpose.msra.mxu0 0.0
  %998 = vmatprep.subr.mxu0 0.0
  %999 = vmatpush1.xpose.msra.mxu0 0.0
  %1000 = vmatprep.subr.mxu0 0.0
  %1001 = vmatpush1.xpose.msra.mxu0 0.0
  %1002 = vmatprep.subr.mxu0 0.0
  %1003 = vmatpush1.xpose.msra.mxu0 0.0
  %1004 = vmatprep.subr.mxu0 0.0
  %1005 = vmatpush1.xpose.msra.mxu0 0.0
  %1006 = vmatprep.subr.mxu0 0.0
  %1007 = vmatpush1.xpose.msra.mxu0 0.0
  %1008 = vmatprep.mubr.f32.mxu0 0.0
  %1009 = vmatmul.mubr.f32.gmra.mrb[0].mxu0 %v438
  %v1010 = vpop.f32.mrb[0].mxu0
  %v1011 = vadd.f32 %v436, %v1010
  %v1012 = vpop.f32.mrb[0].mxu0
  %1013 = vdwg.mxu0
  %v1014 = vsub.f32 0.0, %v555
  %v1015 = vmax.f32 %v1014, 0.0
  %v1016 = vand.u32 2147483647, %v1014
  %v1017 = vsub.f32 0.0, %v1016
  %v1018 = vmul.f32 %v1017, 1.442695
  %v1019 = vpow.pop %v1018
  %v1020 = vadd.f32 %v1019, 1.0
  %v1021 = vlog2.pop %v1020
  %v1022 = vmul.f32 %v1021, 0.6931472
  %v1023 = vadd.f32 %v1015, %v1022
  %v1024 = vmin.f32 %v1023, 100.0
  %v1025 = vmax.f32 %v1011, 0.0
  %v1026 = vand.u32 2147483647, %v1011
  %v1027 = vsub.f32 0.0, %v1026
  %v1028 = vmul.f32 %v1027, 1.442695
  %v1029 = vpow.pop %v1028
  %v1030 = vadd.f32 %v1029, 1.0
  %v1031 = vlog2.pop %v1030
  %v1032 = vmul.f32 %v1031, 0.6931472
  %v1033 = vadd.f32 %v1025, %v1032
  %v1034 = vmin.f32 %v1033, 100.0
  %v1035 = vld [vmem:[%s4] sm:$0x1]
  %v1036 = vld [vmem:[%s2] sm:$0x1]
  %v1037 = vmul.f32 %v1036, %v1024
  %vm1038 = vcmask 1040384
  %v1039 = vsel %vm1038, %v1037, 0.0
  %1040 = vadd.xlane.f32.xlu0 %v1039
  %v1041 = vpop.xlane.xlu0 %1040
  %v1042 = vrot.slane %v1041, 4
  %v1043 = vadd.f32 %v1041, %v1042
  %v1044 = vrot.slane %v1043, 2
  %v1045 = vadd.f32 %v1043, %v1044
  %v1046 = vrot.slane %v1045, 1
  %v1047 = vadd.f32 %v1045, %v1046
  %s1048 = vtos %v1047
  %v1049 = vld [vmem:[%s3] sm:$0x1]
  %v1050 = vmul.f32 %v1049, %v1034
  %v1051 = vsel %vm1038, %v1050, 0.0
  %1052 = vadd.xlane.f32.xlu0 %v1051
  %v1053 = vpop.xlane.xlu0 %1052
  %v1054 = vrot.slane %v1053, 4
  %v1055 = vadd.f32 %v1053, %v1054
  %v1056 = vrot.slane %v1055, 2
  %v1057 = vadd.f32 %v1055, %v1056
  %v1058 = vrot.slane %v1057, 1
  %v1059 = vadd.f32 %v1057, %v1058
  %s1060 = vtos %v1059
  %vm1061 = vcmp.ge.f32.partialorder %v555, 0.0
  %v1062 = vsel %vm1061, 1, 0
  %v1063 = vcvt.s32.f32 %v1062
  %v1064 = vmul.f32 %v1035, %v1063
  %v1065 = vsel %vm1038, %v1064, 0.0
  %1066 = vadd.xlane.f32.xlu0 %v1065
  %v1067 = vpop.xlane.xlu0 %1066
  %v1068 = vrot.slane %v1067, 4
  %v1069 = vadd.f32 %v1067, %v1068
  %v1070 = vrot.slane %v1069, 2
  %v1071 = vadd.f32 %v1069, %v1070
  %v1072 = vrot.slane %v1071, 1
  %v1073 = vadd.f32 %v1071, %v1072
  %s1074 = vtos %v1073
  %vm1075 = vcmp.lt.f32.partialorder %v1011, 0.0
  %v1076 = vsel %vm1075, 1, 0
  %v1077 = vcvt.s32.f32 %v1076
  %v1078 = vmul.f32 %v1035, %v1077
  %v1079 = vsel %vm1038, %v1078, 0.0
  %1080 = vadd.xlane.f32.xlu0 %v1079
  %v1081 = vpop.xlane.xlu0 %1080
  %v1082 = vrot.slane %v1081, 4
  %v1083 = vadd.f32 %v1081, %v1082
  %v1084 = vrot.slane %v1083, 2
  %v1085 = vadd.f32 %v1083, %v1084
  %v1086 = vrot.slane %v1085, 1
  %v1087 = vadd.f32 %v1085, %v1086
  %s1088 = vtos %v1087
  %v1089 = vlaneseq
  %v1090 = vand.u32 %v1089, 127
  %vm1091 = vcmp.eq.s32.totalorder %v1090, 0
  %v1092 = vstv %s1048
  %v1093 = vsel %vm1091, %v1092, 0.0
  %vm1094 = vcmp.eq.s32.totalorder %v1090, 1
  %v1095 = vstv %s1060
  %v1096 = vsel %vm1094, %v1095, 0.0
  %v1097 = vadd.f32 %v1093, %v1096
  %vm1098 = vcmp.eq.s32.totalorder %v1090, 2
  %v1099 = vstv %s1074
  %v1100 = vsel %vm1098, %v1099, 0.0
  %v1101 = vadd.f32 %v1097, %v1100
  %vm1102 = vcmp.eq.s32.totalorder %v1090, 3
  %v1103 = vstv %s1088
  %v1104 = vsel %vm1102, %v1103, 0.0
  %v1105 = vadd.f32 %v1101, %v1104
  %1106 = vst [vmem:[%s11] sm:$0x1] %v1105
  // Predicated region
  $region46: #{dann_loss.1} parent=0 // pred_check
    _
  $region47: #{dann_loss.1} parent=0 // pred_check_branch
    %1108 = sbr.rel (0) target = $region49
  $region48: #{dann_loss.1} parent=0 // pred_region
    _
  $region49: #{dann_loss.1} parent=0 // pred_fallthru
    _
  // Predicated region
  $region50: #{dann_loss.1} parent=0 // pred_check
    _
  $region51: #{dann_loss.1} parent=0 // pred_check_branch
    %1110 = sbr.rel (0) target = $region53
  $region52: #{dann_loss.1} parent=0 // pred_region
    _
  $region53: #{dann_loss.1} parent=0 // pred_fallthru
    _

</llo_original>
